<compile_context>
chip_gen: v5e
topology: v5e:2x2
jax: 0.10.0
libtpu: 0.0.40
codegen_flags: <defaults>
</compile_context>

<pallas_src>
import jax
import jax.numpy as jnp
from jax.experimental import pallas as pl
from jax.experimental.pallas import tpu as pltpu

LANE = 128
SUBLANE = 8


def _round_up(x, m):
    return ((x + m - 1) // m) * m


def qnetwork_kernel(x_ref, w1_ref, b1_ref, w2_ref, b2_ref, w3_ref, b3_ref,
                    out_ref):
    # fc1 + ReLU (MXU dot with f32 accumulation; elementwise stays f32)
    h1 = jnp.dot(x_ref[...], w1_ref[...], preferred_element_type=jnp.float32)
    h1 = jnp.maximum(h1 + b1_ref[...], 0.0)
    h1 = h1.astype(w2_ref.dtype)          # back to MXU input dtype (f32 or bf16)
    # fc2 + ReLU
    h2 = jnp.dot(h1, w2_ref[...], preferred_element_type=jnp.float32)
    h2 = jnp.maximum(h2 + b2_ref[...], 0.0)
    h2 = h2.astype(w3_ref.dtype)
    # fc3 (no activation); output lanes are padded to a multiple of 128 so the
    # store is lane-dense (unmasked vst).
    out = jnp.dot(h2, w3_ref[...], preferred_element_type=jnp.float32)
    out_ref[...] = (out + b3_ref[...]).astype(out_ref.dtype)


def qnetwork_forward(x, params, *, tb_max=512, compute_dtype=jnp.float32):
    """x: (B, state_size) float32. params: dict of w1,b1,w2,b2,w3,b3 (f32).

    compute_dtype: jnp.float32 everywhere-safe; jnp.bfloat16 recommended on
    v6e/v7x (f32 accumulation is kept inside the kernel regardless).
    """
    w1, b1 = params["w1"], params["b1"]
    w2, b2 = params["w2"], params["b2"]
    w3, b3 = params["w3"], params["b3"]

    B, S = x.shape
    H1 = w1.shape[1]
    H2 = w2.shape[1]
    A = w3.shape[1]

    # ---- lane-dense output: pad last layer to a multiple of 128 lanes ----
    A_pad = _round_up(A, LANE)
    if A_pad != A:
        w3 = jnp.pad(w3, ((0, 0), (0, A_pad - A)))
        b3 = jnp.pad(b3, ((0, 0), (0, A_pad - A)))

    # ---- batch tiling: pad batch to sublane multiple, tile with TB ----
    B_pad = _round_up(B, SUBLANE)
    if B_pad <= tb_max:
        tb = B_pad                       # single tile covers the whole batch
    else:
        tb = tb_max                      # multiple-of-128 MXU-filling tile
        B_pad = _round_up(B, tb)
    if B_pad != B:
        x = jnp.pad(x, ((0, B_pad - B), (0, 0)))

    # ---- optional reduced-precision MXU inputs (biases stay f32) ----
    if compute_dtype != jnp.float32:
        x = x.astype(compute_dtype)
        w1 = w1.astype(compute_dtype)
        w2 = w2.astype(compute_dtype)
        w3 = w3.astype(compute_dtype)

    grid = (B_pad // tb,)

    # Weights/biases: constant block index across the batch axis -> fetched
    # once, VMEM-resident for every grid step.
    resident = lambda shape: pl.BlockSpec(shape, lambda i: (0, 0))

    flops = 2 * B_pad * (S * H1 + H1 * H2 + H2 * A_pad)
    bytes_accessed = (
        x.size * x.dtype.itemsize
        + sum(a.size * a.dtype.itemsize for a in (w1, b1, w2, b2, w3, b3))
        + B_pad * A_pad * 4)

    out = pl.pallas_call(
        qnetwork_kernel,
        out_shape=jax.ShapeDtypeStruct((B_pad, A_pad), jnp.float32),
        grid=grid,
        in_specs=[
            pl.BlockSpec((tb, S), lambda i: (i, 0)),       # x: streamed per tile
            resident(w1.shape), resident(b1.shape),
            resident(w2.shape), resident(b2.shape),
            resident(w3.shape), resident(b3.shape),
        ],
        out_specs=pl.BlockSpec((tb, A_pad), lambda i: (i, 0)),
        compiler_params=pltpu.CompilerParams(
            dimension_semantics=("parallel",)),
        cost_estimate=pl.CostEstimate(
            flops=flops, transcendentals=0, bytes_accessed=bytes_accessed),
    )(x, w1, b1, w2, b2, w3, b3)

    # Slice the lane/batch padding back off (zero-cost wrapper slice).
    return out[:B, :A]


def init_params(key, state_size, action_size):
    """Deterministic init mirroring nn.Linear default (uniform +/- 1/sqrt(fan_in))."""
    sizes = [(state_size, 128), (128, 64), (64, action_size)]
    params = {}
    for i, (fan_in, fan_out) in enumerate(sizes, start=1):
        key, kw, kb = jax.random.split(key, 3)
        bound = 1.0 / jnp.sqrt(float(fan_in))
        params[f"w{i}"] = jax.random.uniform(
            kw, (fan_in, fan_out), jnp.float32, -bound, bound)
        params[f"b{i}"] = jax.random.uniform(
            kb, (1, fan_out), jnp.float32, -bound, bound)
    return params


def reference_forward(x, params):
    h1 = jnp.maximum(x @ params["w1"] + params["b1"], 0.0)
    h2 = jnp.maximum(h1 @ params["w2"] + params["b2"], 0.0)
    return h2 @ params["w3"] + params["b3"]


if __name__ == "__main__":
    state_size = 16
    action_size = 4
    batch = 8

    key = jax.random.PRNGKey(0)
    key, kx = jax.random.split(key)
    x = jax.random.normal(kx, (batch, state_size), jnp.float32)
    params = init_params(key, state_size, action_size)

    ref = reference_forward(x, params)

    # Full-precision path (exact vs. reference).
    out_f32 = jax.block_until_ready(qnetwork_forward(x, params))
    assert out_f32.shape == (batch, action_size)
    assert jnp.allclose(out_f32, ref, atol=1e-5, rtol=1e-5)

    # Reduced-precision MXU-input path (v6e/v7x-style), f32 accumulation.
    out_bf16 = jax.block_until_ready(
        qnetwork_forward(x, params, compute_dtype=jnp.bfloat16))
    assert out_bf16.shape == (batch, action_size)
    assert jnp.allclose(out_bf16, ref, atol=3e-2, rtol=3e-2)

    print("KERNEL_OK")
</pallas_src>

<mosaic_0001>
module attributes {stable_mosaic.version = 11 : i64} {
  func.func @qnetwork_kernel(%arg0: i32, %arg1: memref<8x16xf32, #tpu.memory_space<vmem>>, %arg2: memref<16x128xf32, #tpu.memory_space<vmem>>, %arg3: memref<1x128xf32, #tpu.memory_space<vmem>>, %arg4: memref<128x64xf32, #tpu.memory_space<vmem>>, %arg5: memref<1x64xf32, #tpu.memory_space<vmem>>, %arg6: memref<64x128xf32, #tpu.memory_space<vmem>>, %arg7: memref<1x128xf32, #tpu.memory_space<vmem>>, %arg8: memref<8x128xf32, #tpu.memory_space<vmem>>) attributes {dimension_semantics = [#tpu.dimension_semantics<parallel>], iteration_bounds = array<i64: 1>, scalar_prefetch = 0 : i64, scratch_operands = 0 : i64, tpu.core_type = #tpu.core_type<tc>, window_params = [{transform_indices = @transform_0, window_bounds = array<i64: 8, 16>}, {pipeline_mode = #tpu.pipeline_mode<synchronous>, transform_indices = @transform_1, window_bounds = array<i64: 16, 128>}, {pipeline_mode = #tpu.pipeline_mode<synchronous>, transform_indices = @transform_2, window_bounds = array<i64: 1, 128>}, {pipeline_mode = #tpu.pipeline_mode<synchronous>, transform_indices = @transform_3, window_bounds = array<i64: 128, 64>}, {pipeline_mode = #tpu.pipeline_mode<synchronous>, transform_indices = @transform_4, window_bounds = array<i64: 1, 64>}, {pipeline_mode = #tpu.pipeline_mode<synchronous>, transform_indices = @transform_5, window_bounds = array<i64: 64, 128>}, {pipeline_mode = #tpu.pipeline_mode<synchronous>, transform_indices = @transform_6, window_bounds = array<i64: 1, 128>}, {transform_indices = @transform_7, window_bounds = array<i64: 8, 128>}]} {
    %c0 = arith.constant 0 : index
    %c0_0 = arith.constant 0 : index
    %0 = vector.load %arg1[%c0, %c0_0] : memref<8x16xf32, #tpu.memory_space<vmem>>, vector<8x16xf32>
    %c0_1 = arith.constant 0 : index
    %c0_2 = arith.constant 0 : index
    %1 = vector.load %arg2[%c0_1, %c0_2] : memref<16x128xf32, #tpu.memory_space<vmem>>, vector<16x128xf32>
    %cst = arith.constant dense<0.000000e+00> : vector<8x128xf32>
    %2 = tpu.matmul %0, %1, %cst {dimension_numbers = #tpu.dot_dimension_numbers<[1], [0], [0], [1], [0, 0, 1, 1], [], []>} : vector<8x16xf32>, vector<16x128xf32>, vector<8x128xf32> -> vector<8x128xf32>
    %c0_3 = arith.constant 0 : index
    %c0_4 = arith.constant 0 : index
    %3 = vector.load %arg3[%c0_3, %c0_4] : memref<1x128xf32, #tpu.memory_space<vmem>>, vector<1x128xf32>
    %4 = vector.broadcast %3 : vector<1x128xf32> to vector<8x128xf32>
    %5 = arith.addf %2, %4 : vector<8x128xf32>
    %cst_5 = arith.constant 0.000000e+00 : f32
    %6 = vector.broadcast %cst_5 : f32 to vector<8x128xf32>
    %7 = arith.maximumf %5, %6 : vector<8x128xf32>
    %c0_6 = arith.constant 0 : index
    %c0_7 = arith.constant 0 : index
    %8 = vector.load %arg4[%c0_6, %c0_7] : memref<128x64xf32, #tpu.memory_space<vmem>>, vector<128x64xf32>
    %cst_8 = arith.constant dense<0.000000e+00> : vector<8x64xf32>
    %9 = tpu.matmul %7, %8, %cst_8 {dimension_numbers = #tpu.dot_dimension_numbers<[1], [0], [0], [1], [0, 0, 1, 1], [], []>} : vector<8x128xf32>, vector<128x64xf32>, vector<8x64xf32> -> vector<8x64xf32>
    %c0_9 = arith.constant 0 : index
    %c0_10 = arith.constant 0 : index
    %10 = vector.load %arg5[%c0_9, %c0_10] : memref<1x64xf32, #tpu.memory_space<vmem>>, vector<1x64xf32>
    %11 = vector.broadcast %10 : vector<1x64xf32> to vector<8x64xf32>
    %12 = arith.addf %9, %11 : vector<8x64xf32>
    %cst_11 = arith.constant 0.000000e+00 : f32
    %13 = vector.broadcast %cst_11 : f32 to vector<8x64xf32>
    %14 = arith.maximumf %12, %13 : vector<8x64xf32>
    %c0_12 = arith.constant 0 : index
    %c0_13 = arith.constant 0 : index
    %15 = vector.load %arg6[%c0_12, %c0_13] : memref<64x128xf32, #tpu.memory_space<vmem>>, vector<64x128xf32>
    %cst_14 = arith.constant dense<0.000000e+00> : vector<8x128xf32>
    %16 = tpu.matmul %14, %15, %cst_14 {dimension_numbers = #tpu.dot_dimension_numbers<[1], [0], [0], [1], [0, 0, 1, 1], [], []>} : vector<8x64xf32>, vector<64x128xf32>, vector<8x128xf32> -> vector<8x128xf32>
    %c0_15 = arith.constant 0 : index
    %c0_16 = arith.constant 0 : index
    %17 = vector.load %arg7[%c0_15, %c0_16] : memref<1x128xf32, #tpu.memory_space<vmem>>, vector<1x128xf32>
    %18 = vector.broadcast %17 : vector<1x128xf32> to vector<8x128xf32>
    %19 = arith.addf %16, %18 : vector<8x128xf32>
    %c0_17 = arith.constant 0 : index
    %c0_18 = arith.constant 0 : index
    %20 = vector.load %arg8[%c0_17, %c0_18] : memref<8x128xf32, #tpu.memory_space<vmem>>, vector<8x128xf32>
    tpu.vector_store %arg8[%c0_17, %c0_18], %19 {strides = array<i32>} : memref<8x128xf32, #tpu.memory_space<vmem>>, vector<8x128xf32>,
    return
  }
  func.func @transform_0(%arg0: i32) -> (i32, i32) {
    %c0_i32 = arith.constant 0 : i32
    %c0_i32_0 = arith.constant 0 : i32
    return %arg0, %c0_i32 : i32, i32
  }
  func.func @transform_1(%arg0: i32) -> (i32, i32) {
    %c0_i32 = arith.constant 0 : i32
    %c0_i32_0 = arith.constant 0 : i32
    %c0_i32_1 = arith.constant 0 : i32
    return %c0_i32, %c0_i32_0 : i32, i32
  }
  func.func @transform_2(%arg0: i32) -> (i32, i32) {
    %c0_i32 = arith.constant 0 : i32
    %c0_i32_0 = arith.constant 0 : i32
    %c0_i32_1 = arith.constant 0 : i32
    return %c0_i32, %c0_i32_0 : i32, i32
  }
  func.func @transform_3(%arg0: i32) -> (i32, i32) {
    %c0_i32 = arith.constant 0 : i32
    %c0_i32_0 = arith.constant 0 : i32
    %c0_i32_1 = arith.constant 0 : i32
    return %c0_i32, %c0_i32_0 : i32, i32
  }
  func.func @transform_4(%arg0: i32) -> (i32, i32) {
    %c0_i32 = arith.constant 0 : i32
    %c0_i32_0 = arith.constant 0 : i32
    %c0_i32_1 = arith.constant 0 : i32
    return %c0_i32, %c0_i32_0 : i32, i32
  }
  func.func @transform_5(%arg0: i32) -> (i32, i32) {
    %c0_i32 = arith.constant 0 : i32
    %c0_i32_0 = arith.constant 0 : i32
    %c0_i32_1 = arith.constant 0 : i32
    return %c0_i32, %c0_i32_0 : i32, i32
  }
  func.func @transform_6(%arg0: i32) -> (i32, i32) {
    %c0_i32 = arith.constant 0 : i32
    %c0_i32_0 = arith.constant 0 : i32
    %c0_i32_1 = arith.constant 0 : i32
    return %c0_i32, %c0_i32_0 : i32, i32
  }
  func.func @transform_7(%arg0: i32) -> (i32, i32) {
    %c0_i32 = arith.constant 0 : i32
    %c0_i32_0 = arith.constant 0 : i32
    return %arg0, %c0_i32 : i32, i32
  }
}

</mosaic_0001>

<llo_original>
// kernel: tpu_custom_call.1
$region0: #{tpu_custom_call.1}
  #allocation0 [shape = 'u32[]', space=smem, size = 0x4, offset = 0x4, fixed_abs, tag = 'smem constant byte address 0x4 - core index']
  #allocation1 [shape = 'u32[72,128]{1,0:T(1,128)}', space=vmem, size = 0x9000, scoped, tag = 'internal scratch']
  %s0 = inlined_call_operand.vmem [shape: f32[8,16], index: 0, kind: input, shape index: {}]
  %s1 = inlined_call_operand.vmem [shape: f32[16,128], index: 1, kind: input, shape index: {}]
  %s2 = inlined_call_operand.vmem [shape: f32[1,128], index: 2, kind: input, shape index: {}]
  %s3 = inlined_call_operand.vmem [shape: f32[128,64], index: 3, kind: input, shape index: {}]
  %s4 = inlined_call_operand.vmem [shape: f32[1,64], index: 4, kind: input, shape index: {}]
  %s5 = inlined_call_operand.vmem [shape: f32[64,128], index: 5, kind: input, shape index: {}]
  %s6 = inlined_call_operand.vmem [shape: f32[1,128], index: 6, kind: input, shape index: {}]
  %s7 = inlined_call_operand.hbm [shape: f32[8,128], index: 7, kind: output, shape index: {}]
  %s8 = sld [smem:[#allocation0]]
  $region38: #{tpu_custom_call.1} parent=0
    _
  %s10 = ssub.s32 1, %s8
  %s11 = scalar_select 0, %s10, %s8
  $region1: #{tpu_custom_call.1} parent=0
    #allocation2 [shape = 'u8[4096]{0}', space=vmem, size = 0x1000, scoped, tag = 'output window, operand 0, single buffered']
    #allocation3 [shape = 's32[1]{0}', space=sflag, size = 0x4, scoped, tag = 'scoped memory for tpu_custom_call.1']
    %12 = vsyncpa [#allocation3], 0
    // Predicated region
    $region2: #{tpu_custom_call.1} parent=1 // pred_check
      _
    $region3: #{tpu_custom_call.1} parent=1 // pred_check_branch
      %14 = sbr.rel (0) target = $region5
    $region4: #{tpu_custom_call.1} parent=1 // pred_region
      _
    $region5: #{tpu_custom_call.1} parent=1 // pred_fallthru
      _
    // Predicated region
    $region6: #{tpu_custom_call.1} parent=1 // pred_check
      _
    $region7: #{tpu_custom_call.1} parent=1 // pred_check_branch
      %16 = sbr.rel (0) target = $region9
    $region8: #{tpu_custom_call.1} parent=1 // pred_region
      _
    $region9: #{tpu_custom_call.1} parent=1 // pred_fallthru
      _
    // Predicated region
    $region10: #{tpu_custom_call.1} parent=1 // pred_check
      _
    $region11: #{tpu_custom_call.1} parent=1 // pred_check_branch
      %18 = sbr.rel (0) target = $region13
    $region12: #{tpu_custom_call.1} parent=1 // pred_region
      _
    $region13: #{tpu_custom_call.1} parent=1 // pred_fallthru
      _
    // Predicated region
    $region14: #{tpu_custom_call.1} parent=1 // pred_check
      _
    $region15: #{tpu_custom_call.1} parent=1 // pred_check_branch
      %20 = sbr.rel (0) target = $region17
    $region16: #{tpu_custom_call.1} parent=1 // pred_region
      _
    $region17: #{tpu_custom_call.1} parent=1 // pred_fallthru
      _
    // Predicated region
    $region18: #{tpu_custom_call.1} parent=1 // pred_check
      _
    $region19: #{tpu_custom_call.1} parent=1 // pred_check_branch
      %22 = sbr.rel (0) target = $region21
    $region20: #{tpu_custom_call.1} parent=1 // pred_region
      _
    $region21: #{tpu_custom_call.1} parent=1 // pred_fallthru
      _
    // Predicated region
    $region22: #{tpu_custom_call.1} parent=1 // pred_check
      _
    $region23: #{tpu_custom_call.1} parent=1 // pred_check_branch
      %24 = sbr.rel (0) target = $region25
    $region24: #{tpu_custom_call.1} parent=1 // pred_region
      _
    $region25: #{tpu_custom_call.1} parent=1 // pred_fallthru
      _
    // Predicated region
    $region26: #{tpu_custom_call.1} parent=1 // pred_check
      _
    $region27: #{tpu_custom_call.1} parent=1 // pred_check_branch
      %26 = sbr.rel (0) target = $region29
    $region28: #{tpu_custom_call.1} parent=1 // pred_region
      _
    $region29: #{tpu_custom_call.1} parent=1 // pred_fallthru
      _
    %v27 = vld [vmem:[%s0] sm:$0xff]
    %v28 = vld [vmem:[%s1] sm:$0xff]
    %v29 = vld [vmem:[%s1 + $0x8] sm:$0xff]
    %v30 = vld [vmem:[%s2] sm:$0x1]
    %v32 = vperm.slane %v30, 0
    %vm34 = vcmask 130048
    %v36 = vsel %vm34, %v27, 0
    %38 = vmatpush.msra.mxu0 0.0
    %39 = vmatpush.msra.mxu0 0.0
    %40 = vmatpush.msra.mxu0 0.0
    %41 = vmatpush.msra.mxu0 0.0
    %42 = vmatpush.msra.mxu0 0.0
    %43 = vmatpush.msra.mxu0 0.0
    %44 = vmatpush.msra.mxu0 0.0
    %45 = vmatpush.msra.mxu0 0.0
    %46 = vmatpush.msra.mxu0 0.0
    %47 = vmatpush.msra.mxu0 0.0
    %48 = vmatpush.msra.mxu0 0.0
    %49 = vmatpush.msra.mxu0 0.0
    %50 = vmatpush.msra.mxu0 0.0
    %51 = vmatpush.msra.mxu0 0.0
    %52 = vmatpush.msra.mxu0 %v29
    %53 = vmatpush.msra.mxu0 %v28
    %54 = vmatmul.f32.gmra.mxu0 %v36
    %v55 = vpop.f32.mrf.mxu0
    %v56 = vadd.f32 %v32, %v55
    %57 = vdwg.mxu0
    %v58 = vmax.f32 %v56, 0.0
    %v59 = vld [vmem:[%s3] sm:$0xff]
    %v60 = vld [vmem:[%s3 + $0x8] sm:$0xff]
    %v61 = vld [vmem:[%s3 + $0x10] sm:$0xff]
    %v62 = vld [vmem:[%s3 + $0x18] sm:$0xff]
    %v63 = vld [vmem:[%s3 + $0x20] sm:$0xff]
    %v64 = vld [vmem:[%s3 + $0x28] sm:$0xff]
    %v65 = vld [vmem:[%s3 + $0x30] sm:$0xff]
    %v66 = vld [vmem:[%s3 + $0x38] sm:$0xff]
    %v67 = vld [vmem:[%s3 + $0x40] sm:$0xff]
    %v68 = vld [vmem:[%s3 + $0x48] sm:$0xff]
    %v69 = vld [vmem:[%s3 + $0x50] sm:$0xff]
    %v70 = vld [vmem:[%s3 + $0x58] sm:$0xff]
    %v71 = vld [vmem:[%s3 + $0x60] sm:$0xff]
    %v72 = vld [vmem:[%s3 + $0x68] sm:$0xff]
    %v73 = vld [vmem:[%s3 + $0x70] sm:$0xff]
    %v74 = vld [vmem:[%s3 + $0x78] sm:$0xff]
    %v75 = vld [vmem:[%s4] sm:$0x1]
    %v77 = vperm.slane %v75, 0
    %79 = vmatpush.msra.mxu0 %v74
    %80 = vmatpush.msra.mxu0 %v73
    %81 = vmatpush.msra.mxu0 %v72
    %82 = vmatpush.msra.mxu0 %v71
    %83 = vmatpush.msra.mxu0 %v70
    %84 = vmatpush.msra.mxu0 %v69
    %85 = vmatpush.msra.mxu0 %v68
    %86 = vmatpush.msra.mxu0 %v67
    %87 = vmatpush.msra.mxu0 %v66
    %88 = vmatpush.msra.mxu0 %v65
    %89 = vmatpush.msra.mxu0 %v64
    %90 = vmatpush.msra.mxu0 %v63
    %91 = vmatpush.msra.mxu0 %v62
    %92 = vmatpush.msra.mxu0 %v61
    %93 = vmatpush.msra.mxu0 %v60
    %94 = vmatpush.msra.mxu0 %v59
    %95 = vmatmul.f32.gmra.mxu0 %v58
    %v96 = vpop.f32.mrf.mxu0
    %v97 = vadd.f32 %v77, %v96
    %98 = vdwg.mxu0
    %v99 = vmax.f32 %v97, 0.0
    %v100 = vld [vmem:[%s5] sm:$0xff]
    %v101 = vld [vmem:[%s5 + $0x8] sm:$0xff]
    %v102 = vld [vmem:[%s5 + $0x10] sm:$0xff]
    %v103 = vld [vmem:[%s5 + $0x18] sm:$0xff]
    %v104 = vld [vmem:[%s5 + $0x20] sm:$0xff]
    %v105 = vld [vmem:[%s5 + $0x28] sm:$0xff]
    %v106 = vld [vmem:[%s5 + $0x30] sm:$0xff]
    %v107 = vld [vmem:[%s5 + $0x38] sm:$0xff]
    %v108 = vld [vmem:[%s6] sm:$0x1]
    %v110 = vperm.slane %v108, 0
    %vm112 = vcmask 523264
    %v114 = vsel %vm112, %v99, 0
    %116 = vmatpush.msra.mxu0 0.0
    %117 = vmatpush.msra.mxu0 0.0
    %118 = vmatpush.msra.mxu0 0.0
    %119 = vmatpush.msra.mxu0 0.0
    %120 = vmatpush.msra.mxu0 0.0
    %121 = vmatpush.msra.mxu0 0.0
    %122 = vmatpush.msra.mxu0 0.0
    %123 = vmatpush.msra.mxu0 0.0
    %124 = vmatpush.msra.mxu0 %v107
    %125 = vmatpush.msra.mxu0 %v106
    %126 = vmatpush.msra.mxu0 %v105
    %127 = vmatpush.msra.mxu0 %v104
    %128 = vmatpush.msra.mxu0 %v103
    %129 = vmatpush.msra.mxu0 %v102
    %130 = vmatpush.msra.mxu0 %v101
    %131 = vmatpush.msra.mxu0 %v100
    %132 = vmatmul.f32.gmra.mxu0 %v114
    %v133 = vpop.f32.mrf.mxu0
    %v134 = vadd.f32 %v110, %v133
    %135 = vdwg.mxu0
    %136 = vst [vmem:[#allocation2] sm:$0xff] %v134
    // Predicated region
    $region30: #{tpu_custom_call.1} parent=1 // pred_check
      _
    $region31: #{tpu_custom_call.1} parent=1 // pred_check_branch
      %138 = sbr.rel (0) target = $region33
    $region32: #{tpu_custom_call.1} parent=1 // pred_region
      %140 = vsyncadd [#allocation3], 0
      %s142 = sshll.u32 [#allocation2], 4
      %s143 = int_to_ptr.vmem [resolvable:$true] %s142
      %s144 = sshll.u32 %s7, 4
      %s145 = int_to_ptr.hbm [resolvable:$true] %s144
      %147 = dma.vmem_to_hbm [thread:$0]  %s143, 128, %s145, [#allocation3]
    $region33: #{tpu_custom_call.1} parent=1 // pred_fallthru
      _
    // Predicated region
    $region34: #{tpu_custom_call.1} parent=1 // pred_check
      _
    $region35: #{tpu_custom_call.1} parent=1 // pred_check_branch
      %149 = sbr.rel (0) target = $region37
    $region36: #{tpu_custom_call.1} parent=1 // pred_region
      %151 = dma.done [#allocation3], 128
    $region37: #{tpu_custom_call.1} parent=1 // pred_fallthru
      _
    %152 = vsyncpa [#allocation3], 1

</llo_original>
